<compile_context>
chip_gen: v6e
topology: v6e:2x2x1
jax: 0.10.0
libtpu: 0.0.40
codegen_flags: <defaults>
</compile_context>

<pallas_src>
import functools

import numpy as np
import jax
import jax.numpy as jnp
from jax.experimental import pallas as pl
from jax.experimental.pallas import tpu as pltpu

ALPHA = -0.5
BETA = -0.5


def _round_up(v, m):
    return (v + m - 1) // m * m


def _cdiv(a, b):
    return (a + b - 1) // b


def _jacobi_recurrence_coeffs(d, a, b):
    denom0 = 2.0 * d * (d + a + b)
    denom1 = denom0 * (2.0 * d + a + b - 2.0)
    A = (2.0 * d + a + b - 1.0) * (2.0 * d + a + b) / denom0
    B = (2.0 * d + a + b - 1.0) * (a * a - b * b) / denom1
    C = -2.0 * (d + a - 1.0) * (d + b - 1.0) * (2.0 * d + a + b) / denom1
    return A, B, C


def _jacobi_monomial_matrix(degree, a, b):
    """m[d, k] = coefficient of t**k in P_d^{(a,b)}(t) (float64, host)."""
    m = np.zeros((degree + 1, degree + 1), dtype=np.float64)
    m[0, 0] = 1.0
    if degree > 0:
        m[1, 0] = 0.5 * (a - b)
        m[1, 1] = 0.5 * (a + b + 2.0)
    for d in range(2, degree + 1):
        A, B, C = _jacobi_recurrence_coeffs(d, a, b)
        m[d, 1:] += A * m[d - 1, :-1]
        m[d, :] += B * m[d - 1, :]
        m[d, :] += C * m[d - 2, :]
    return m


def _jacobi_kan_kernel(x_ref, w_ref, bias_ref, y_ref, p_ref, *,
                       degree, input_dim, i_pad, a, b, basis, scratch_dtype):
    # x_ref   : (I, n_tile) f32/bf16  -- one lane tile of one batch element
    # w_ref   : (O, K) compute_dtype  -- lane-dense pre-contracted weights
    # bias_ref: (O, 1) f32            -- folded degree-0 contribution
    # y_ref   : (O, n_tile)
    # p_ref   : (K, n_tile) scratch_dtype, K = degree * i_pad
    I = input_dim
    t = jnp.tanh(x_ref[...].astype(jnp.float32))            # (I, n_tile), EUP
    if i_pad > I:
        # Zero-pad rows to sublane granularity: aligned full-slab stores, and
        # the padded rows (t == 0) hit zero weight columns -> contribute 0.
        t = jnp.concatenate(
            [t, jnp.zeros((i_pad - I,) + t.shape[1:], jnp.float32)], axis=0)

    if basis == "monomial":
        # Basis change folded into the weights on the host: kernel only needs
        # powers of t (1 VPU multiply per degree).
        p = t
        p_ref[pl.ds(0, i_pad), :] = p.astype(scratch_dtype)
        for k in range(2, degree + 1):
            p = p * t
            p_ref[pl.ds((k - 1) * i_pad, i_pad), :] = p.astype(scratch_dtype)
    else:
        # Exact Jacobi 3-term recurrence (f32), used for high degrees.
        p_prev2 = jnp.ones_like(t)
        p_prev1 = (a - b + (a + b + 2.0) * t) * 0.5
        p_ref[pl.ds(0, i_pad), :] = p_prev1.astype(scratch_dtype)
        for d in range(2, degree + 1):
            A, Bc, C = _jacobi_recurrence_coeffs(d, a, b)  # static constants
            p = (A * t + Bc) * p_prev1 + C * p_prev2
            p_ref[pl.ds((d - 1) * i_pad, i_pad), :] = p.astype(scratch_dtype)
            p_prev2, p_prev1 = p_prev1, p

    # One stacked-K MXU matmul, f32 accumulation, then the degree-0 bias.
    acc = jnp.dot(w_ref[...], p_ref[...], preferred_element_type=jnp.float32)
    y_ref[...] = (acc + bias_ref[...]).astype(y_ref.dtype)


def jacobi_kan_forward(x, coeffs, *, degree, a=ALPHA, b=BETA,
                       compute_dtype=jnp.bfloat16, out_dtype=jnp.float32,
                       basis="auto", n_tile_target=None):
    """x: (B, I, N) ; coeffs: (I, O, degree+1) -> (B, O, N) in out_dtype."""
    B, I, N = x.shape
    I2, O, Dp1 = coeffs.shape
    assert I == I2 and Dp1 == degree + 1
    assert basis in ("auto", "monomial", "jacobi")
    a = float(a)
    b = float(b)
    for d in range(2, degree + 1):
        assert abs(2 * d * (d + a + b)) > 1e-12 and \
               abs(2 * d * (d + a + b) * (2 * d + a + b - 2)) > 1e-12, \
            "Jacobi recurrence is singular for this (a, b)."

    compute_dtype = jnp.dtype(compute_dtype)
    out_dtype = jnp.dtype(out_dtype)
    scratch_dtype = compute_dtype if compute_dtype.itemsize == 2 \
        else jnp.dtype(jnp.float32)

    if basis == "auto":
        # Monomial basis is well conditioned only for moderate degree
        # (coefficients of Chebyshev-like polys grow ~(1+sqrt(2))^d).
        basis = "monomial" if degree <= (6 if compute_dtype.itemsize == 2
                                         else 10) else "jacobi"

    # ---- host-side basis pre-contraction (no big relayout passes) ---------
    # w_tilde[i,o,k] such that sum_d c[i,o,d] P_d(t) == sum_k w_tilde[i,o,k] B_k(t)
    # with B_k = t^k (monomial) or B_k = P_k (jacobi, w_tilde == coeffs).
    if basis == "monomial":
        m = jnp.asarray(_jacobi_monomial_matrix(degree, a, b).astype(np.float32))
        w_tilde = jnp.einsum('iod,dk->iok', coeffs.astype(jnp.float32), m,
                             precision=jax.lax.Precision.HIGHEST)
    else:
        w_tilde = coeffs.astype(jnp.float32)

    # Degree-0 folded into a per-output bias (B_0 == 1 in either basis).
    bias = jnp.sum(w_tilde[:, :, 0], axis=0).reshape(O, 1).astype(jnp.float32)

    if degree == 0:
        return jnp.broadcast_to(bias.reshape(1, O, 1), (B, O, N)).astype(out_dtype)

    # Sublane-aligned per-degree slab height and stacked contraction dim.
    sub_gran = 8 * (4 // scratch_dtype.itemsize)   # 8 rows (f32) / 16 rows (bf16)
    i_pad = _round_up(I, sub_gran)
    K = degree * i_pad

    # Lane-dense weights: w2d[o, (k-1)*i_pad + i] = w_tilde[i,o,k]; 0 for i>=I.
    w_k = jnp.transpose(w_tilde[:, :, 1:], (2, 0, 1))           # (degree, I, O)
    w_k = jnp.pad(w_k, ((0, 0), (0, i_pad - I), (0, 0)))        # (degree, i_pad, O)
    w2d = w_k.reshape(K, O).T.astype(compute_dtype)             # (O, K)

    # ---- per-chip VMEM budgets & lane-tile selection -----------------------
    try:
        info = pltpu.get_tpu_info()
        vmem_cap = int(getattr(info, "vmem_capacity_bytes", 64 * 2**20))
    except Exception:
        vmem_cap = 64 * 2**20
    big_vmem = vmem_cap >= 100 * 2**20          # v5e/v6e (128 MiB) vs v7x (64 MiB)
    step_cap = 32 * 2**20 if big_vmem else 14 * 2**20
    limit_cap = 96 * 2**20 if big_vmem else 48 * 2**20
    if n_tile_target is None:
        n_tile_target = 1024 if big_vmem else 512

    itemsize_w = compute_dtype.itemsize
    itemsize_o = out_dtype.itemsize

    def _footprint(nt):
        x_b = 2 * I * nt * 4                     # double-buffered input tile
        y_b = 2 * O * nt * itemsize_o            # double-buffered output tile
        w_b = 2 * (O * K * itemsize_w + O * 4)   # resident weights/bias (2 bufs)
        p_b = K * nt * scratch_dtype.itemsize    # stacked-polynomial scratch
        tmp_b = 4 * i_pad * nt * 4               # t + recurrence live values
        return x_b + y_b + w_b + p_b + tmp_b

    n_tile = min(int(n_tile_target), _round_up(N, 128))
    n_tile = max(128, (n_tile // 128) * 128)
    while n_tile > 128 and _footprint(n_tile) > step_cap:
        n_tile -= 128                            # step by 128, don't halve
    if not big_vmem:
        # v7x: prefer >= 8 grid steps so both TensorCores stay busy.
        while n_tile > 128 and B * _cdiv(N, n_tile) < 8:
            n_tile -= 128

    N_pad = _round_up(N, n_tile)
    x_in = x if N_pad == N else jnp.pad(x, ((0, 0), (0, 0), (0, N_pad - N)))

    grid = (B, N_pad // n_tile)
    kernel = functools.partial(
        _jacobi_kan_kernel, degree=degree, input_dim=I, i_pad=i_pad,
        a=a, b=b, basis=basis, scratch_dtype=scratch_dtype)

    cost = pl.CostEstimate(
        flops=2 * B * N * O * degree * I + 8 * B * N * I * degree,
        transcendentals=B * N * I,
        bytes_accessed=4 * B * I * N + itemsize_o * B * O * N + O * K * itemsize_w,
    )

    y_pad = pl.pallas_call(
        kernel,
        out_shape=jax.ShapeDtypeStruct((B, O, N_pad), out_dtype),
        grid_spec=pltpu.PrefetchScalarGridSpec(
            num_scalar_prefetch=0,
            grid=grid,
            in_specs=[
                pl.BlockSpec((None, I, n_tile), lambda bi, j: (bi, 0, j)),  # x
                pl.BlockSpec((O, K), lambda bi, j: (0, 0)),                 # weights
                pl.BlockSpec((O, 1), lambda bi, j: (0, 0)),                 # bias
            ],
            out_specs=pl.BlockSpec((None, O, n_tile), lambda bi, j: (bi, 0, j)),
            scratch_shapes=[pltpu.VMEM((K, n_tile), scratch_dtype)],
        ),
        compiler_params=pltpu.CompilerParams(
            dimension_semantics=("parallel", "parallel"),
            vmem_limit_bytes=int(min(max(2 * _footprint(n_tile), 16 * 2**20),
                                     limit_cap)),
        ),
        cost_estimate=cost,
    )(x_in, w2d, bias)

    return y_pad if N_pad == N else y_pad[:, :, :N]


def _reference_forward(x, coeffs, *, degree, a=ALPHA, b=BETA):
    # Pure-JAX port of the PyTorch forward for validation.
    t = jnp.tanh(jnp.transpose(x, (0, 2, 1)))               # (B, N, I)
    polys = [jnp.ones_like(t)]
    if degree > 0:
        polys.append((a - b + (a + b + 2.0) * t) / 2.0)
    for i in range(2, degree + 1):
        A = (2 * i + a + b - 1) * (2 * i + a + b) / (2 * i * (i + a + b))
        Bc = (2 * i + a + b - 1) * (a ** 2 - b ** 2) / (
            2 * i * (i + a + b) * (2 * i + a + b - 2))
        C = -2 * (i + a - 1) * (i + b - 1) * (2 * i + a + b) / (
            2 * i * (i + a + b) * (2 * i + a + b - 2))
        polys.append((A * t + Bc) * polys[-1] + C * polys[-2])
    jacobi = jnp.stack(polys, axis=-1)                       # (B, N, I, D+1)
    jacobi = jnp.transpose(jacobi, (0, 2, 3, 1))             # (B, I, D+1, N)
    return jnp.einsum('bids,iod->bos', jacobi, coeffs)


if __name__ == "__main__":
    batch = 2
    input_dim = 4
    output_dim = 8
    num_points = 16
    degree = 3

    key = jax.random.PRNGKey(0)
    kx, kc = jax.random.split(key)

    x = jax.random.normal(kx, (batch, input_dim, num_points), dtype=jnp.float32)
    # nn.init.normal_(coeffs, mean=0, std=1/(input_dim*(degree+1)))
    coeffs = (1.0 / (input_dim * (degree + 1))) * jax.random.normal(
        kc, (input_dim, output_dim, degree + 1), dtype=jnp.float32)

    y_ref = _reference_forward(x, coeffs, degree=degree)

    # Fast path: bf16 MXU operands + monomial pre-contraction, f32 accumulate.
    y_bf16 = jax.block_until_ready(
        jacobi_kan_forward(x, coeffs, degree=degree, compute_dtype=jnp.bfloat16))
    assert y_bf16.shape == (batch, output_dim, num_points)
    assert jnp.allclose(y_bf16, y_ref, atol=2e-2, rtol=2e-2)

    # f32 path (monomial basis auto-selected at this degree).
    y_f32 = jax.block_until_ready(
        jacobi_kan_forward(x, coeffs, degree=degree, compute_dtype=jnp.float32))
    assert jnp.allclose(y_f32, y_ref, atol=1e-5, rtol=1e-5)

    # f32 Jacobi-recurrence fallback path (used automatically for high degree).
    y_jac = jax.block_until_ready(
        jacobi_kan_forward(x, coeffs, degree=degree, compute_dtype=jnp.float32,
                           basis="jacobi"))
    assert jnp.allclose(y_jac, y_ref, atol=1e-5, rtol=1e-5)

    print("KERNEL_OK")
</pallas_src>

<mosaic_0001>
module attributes {stable_mosaic.version = 11 : i64} {
  func.func @_jacobi_kan_kernel(%arg0: i32, %arg1: i32, %arg2: memref<1x4x128xf32, #tpu.memory_space<vmem>>, %arg3: memref<8x48xbf16, #tpu.memory_space<vmem>>, %arg4: memref<8x1xf32, #tpu.memory_space<vmem>>, %arg5: memref<1x8x128xf32, #tpu.memory_space<vmem>>, %arg6: memref<48x128xbf16, #tpu.memory_space<vmem>>) attributes {dimension_semantics = [#tpu.dimension_semantics<parallel>, #tpu.dimension_semantics<parallel>], iteration_bounds = array<i64: 2, 1>, scalar_prefetch = 0 : i64, scratch_operands = 1 : i64, tpu.core_type = #tpu.core_type<tc>, window_params = [{transform_indices = @transform_0, window_bounds = array<i64: 1, 4, 128>}, {pipeline_mode = #tpu.pipeline_mode<synchronous>, transform_indices = @transform_1, window_bounds = array<i64: 8, 48>}, {pipeline_mode = #tpu.pipeline_mode<synchronous>, transform_indices = @transform_2, window_bounds = array<i64: 8, 1>}, {transform_indices = @transform_3, window_bounds = array<i64: 1, 8, 128>}]} {
    %c0 = arith.constant 0 : index
    %c0_0 = arith.constant 0 : index
    %c0_1 = arith.constant 0 : index
    %0 = vector.load %arg2[%c0, %c0_0, %c0_1] : memref<1x4x128xf32, #tpu.memory_space<vmem>>, vector<1x4x128xf32>
    %1 = vector.shape_cast %0 : vector<1x4x128xf32> to vector<4x128xf32>
    %2 = math.tanh %1 : vector<4x128xf32>
    %cst = arith.constant 0.000000e+00 : f32
    %3 = vector.broadcast %cst : f32 to vector<12x128xf32>
    %4 = tpu.concatenate %2, %3 in 0 : vector<4x128xf32>, vector<12x128xf32> -> vector<16x128xf32>
    %5 = arith.truncf %4 : vector<16x128xf32> to vector<16x128xbf16>
    %c0_2 = arith.constant 0 : index
    %c0_3 = arith.constant 0 : index
    %6 = vector.load %arg6[%c0_2, %c0_3] : memref<48x128xbf16, #tpu.memory_space<vmem>>, vector<16x128xbf16>
    tpu.vector_store %arg6[%c0_2, %c0_3], %5 {strides = array<i32>} : memref<48x128xbf16, #tpu.memory_space<vmem>>, vector<16x128xbf16>,
    %7 = arith.mulf %4, %4 : vector<16x128xf32>
    %8 = arith.truncf %7 : vector<16x128xf32> to vector<16x128xbf16>
    %c16 = arith.constant 16 : index
    %c0_4 = arith.constant 0 : index
    %9 = vector.load %arg6[%c16, %c0_4] : memref<48x128xbf16, #tpu.memory_space<vmem>>, vector<16x128xbf16>
    tpu.vector_store %arg6[%c16, %c0_4], %8 {strides = array<i32>} : memref<48x128xbf16, #tpu.memory_space<vmem>>, vector<16x128xbf16>,
    %10 = arith.mulf %7, %4 : vector<16x128xf32>
    %11 = arith.truncf %10 : vector<16x128xf32> to vector<16x128xbf16>
    %c32 = arith.constant 32 : index
    %c0_5 = arith.constant 0 : index
    %12 = vector.load %arg6[%c32, %c0_5] : memref<48x128xbf16, #tpu.memory_space<vmem>>, vector<16x128xbf16>
    tpu.vector_store %arg6[%c32, %c0_5], %11 {strides = array<i32>} : memref<48x128xbf16, #tpu.memory_space<vmem>>, vector<16x128xbf16>,
    %c0_6 = arith.constant 0 : index
    %c0_7 = arith.constant 0 : index
    %13 = vector.load %arg3[%c0_6, %c0_7] : memref<8x48xbf16, #tpu.memory_space<vmem>>, vector<8x48xbf16>
    %c0_8 = arith.constant 0 : index
    %c0_9 = arith.constant 0 : index
    %14 = vector.load %arg6[%c0_8, %c0_9] : memref<48x128xbf16, #tpu.memory_space<vmem>>, vector<48x128xbf16>
    %cst_10 = arith.constant dense<0.000000e+00> : vector<8x128xf32>
    %15 = tpu.matmul %13, %14, %cst_10 {dimension_numbers = #tpu.dot_dimension_numbers<[1], [0], [0], [1], [0, 0, 1, 1], [], []>} : vector<8x48xbf16>, vector<48x128xbf16>, vector<8x128xf32> -> vector<8x128xf32>
    %c0_11 = arith.constant 0 : index
    %c0_12 = arith.constant 0 : index
    %16 = vector.load %arg4[%c0_11, %c0_12] : memref<8x1xf32, #tpu.memory_space<vmem>>, vector<8x1xf32>
    %17 = vector.broadcast %16 : vector<8x1xf32> to vector<8x128xf32>
    %18 = arith.addf %15, %17 : vector<8x128xf32>
    %c0_13 = arith.constant 0 : index
    %c0_14 = arith.constant 0 : index
    %c0_15 = arith.constant 0 : index
    %19 = vector.load %arg5[%c0_13, %c0_14, %c0_15] : memref<1x8x128xf32, #tpu.memory_space<vmem>>, vector<1x8x128xf32>
    %20 = vector.shape_cast %19 : vector<1x8x128xf32> to vector<8x128xf32>
    %21 = vector.shape_cast %18 : vector<8x128xf32> to vector<1x8x128xf32>
    tpu.vector_store %arg5[%c0_13, %c0_14, %c0_15], %21 {strides = array<i32>} : memref<1x8x128xf32, #tpu.memory_space<vmem>>, vector<1x8x128xf32>,
    return
  }
  func.func @transform_0(%arg0: i32, %arg1: i32) -> (i32, i32, i32) {
    %c0_i32 = arith.constant 0 : i32
    %c0_i32_0 = arith.constant 0 : i32
    return %arg0, %c0_i32, %arg1 : i32, i32, i32
  }
  func.func @transform_1(%arg0: i32, %arg1: i32) -> (i32, i32) {
    %c0_i32 = arith.constant 0 : i32
    %c0_i32_0 = arith.constant 0 : i32
    %c0_i32_1 = arith.constant 0 : i32
    return %c0_i32, %c0_i32_0 : i32, i32
  }
  func.func @transform_2(%arg0: i32, %arg1: i32) -> (i32, i32) {
    %c0_i32 = arith.constant 0 : i32
    %c0_i32_0 = arith.constant 0 : i32
    %c0_i32_1 = arith.constant 0 : i32
    return %c0_i32, %c0_i32_0 : i32, i32
  }
  func.func @transform_3(%arg0: i32, %arg1: i32) -> (i32, i32, i32) {
    %c0_i32 = arith.constant 0 : i32
    %c0_i32_0 = arith.constant 0 : i32
    return %arg0, %c0_i32, %arg1 : i32, i32, i32
  }
}

</mosaic_0001>

<llo_original>
// kernel: tpu_custom_call.1
$region0: #{tpu_custom_call.1}
  #allocation0 [shape = 'u32[]', space=smem, size = 0x4, offset = 0x4, fixed_abs, tag = 'smem constant byte address 0x4 - core index']
  #allocation1 [shape = 'u32[144,128]{1,0:T(1,128)}', space=vmem, size = 0x12000, scoped, tag = 'internal scratch']
  #allocation2 [shape = 'bf16[48,128]{1,0:T(8,128)(2,1)}', space=vmem, size = 0x3000, scoped, tag = 'scratch operand']
  %s0 = inlined_call_operand.vmem [shape: f32[2,4,128], index: 0, kind: input, shape index: {}]
  %s1 = inlined_call_operand.hbm [shape: bf16[8,48], index: 1, kind: input, shape index: {}]
  %s2 = inlined_call_operand.vmem [shape: f32[8,1], index: 2, kind: input, shape index: {}]
  %s3 = inlined_call_operand.hbm [shape: f32[2,8,128], index: 3, kind: output, shape index: {}]
  %s4 = sld [smem:[#allocation0]]
  $region49: #{tpu_custom_call.1} parent=0
    _
  %s6 = ssub.s32 1, %s4
  %s7 = scalar_select 0, %s6, %s4
  $region1: #{tpu_custom_call.1} parent=0
    #allocation3 [shape = 'u8[2048]{0}', space=vmem, size = 0x800, scoped, tag = 'input window, operand 1, single buffered']
    #allocation4 [shape = 's32[2]{0}', space=sflag, size = 0x8, scoped, tag = 'scoped memory for tpu_custom_call.1']
    #allocation5 [shape = 's32[2]{0}', space=sflag, size = 0x8, scoped, tag = 'scoped memory for tpu_custom_call.1']
    #allocation6 [shape = 'u8[8192]{0}', space=vmem, size = 0x2000, scoped, tag = 'output window, operand 0']
    %8 = vsyncpa [#allocation4], 0
    %9 = vsyncpa [#allocation5], 0
    %s10 = scalar_lea.sflag [#allocation5], 1
    %11 = vsyncpa %s10, 0
    loop: start=0, step=1, limit=4
    $region2: #{tpu_custom_call.1} parent=1 // loop_pre_header
      _
    $region3: #{tpu_custom_call.1} parent=1 // loop_header
      %s13 = sphi 0, %s17
      %p14 = scmp.ge.s32.totalorder %s13, 4
      %s20 = sphi 0, %s32
      %s21 = sphi 0, %s28
      %s22 = sphi 0, %s20
      %s23 = sphi 0, %s21
      %s24 = sphi 0, %s22
      %s25 = sphi 0, %s23
      %s37 = sphi 0, %s39
      %s40 = sphi 0, %s37
      %s41 = sphi 0, %s40
      %s57 = sphi 0, %s41
      %s61 = sphi 0, %s61
      %s63 = sphi 0, %s61
      %s64 = sphi 0, %s63
      %s78 = sphi 0, %s64
      %s82 = sphi 0, %s82
      %s84 = sphi 0, %s82
      %s85 = sphi 0, %s84
      %s99 = sphi 0, %s85
      %s107 = sphi 0, %s109
      %s110 = sphi 0, %s107
      %s111 = sphi 0, %s110
      %s127 = sphi 0, %s111
    $region4: #{tpu_custom_call.1} parent=1 // loop_header_branch
      %16 = sbr.rel (%p14) target = $region8
    $region5: #{tpu_custom_call.1} parent=1 // loop_body
      %s18 = ssub.s32 %s13, 1
      %s19 = ssub.s32 %s13, 2
      %s26 = sadd.s32 1, %s21
      %p27 = scmp.ge.s32.totalorder %s26, 1
      %s28 = scalar_select %p27, 0, %s26
      %s29 = sadd.s32 1, %s20
      %s30 = scalar_select %p27, %s29, %s20
      %p31 = scmp.ge.s32.totalorder %s30, 2
      %s32 = scalar_select %p31, 0, %s30
      %s33 = ssub.s32 %s20, %s32
      %s34 = ssub.s32 %s21, %s28
      %s35 = sor.u32 %s33, %s34
      %p36 = scmp.eq.s32.totalorder %s35, 0
      %s38 = sadd.s32 %s37, 1
      %s39 = scalar_select %p36, %s37, %s38
      %p42 = pneg %p36
      %p43 = scmp.eq.s32.totalorder %s13, 1
      %p44 = por %p42, %p43
      %p45 = scmp.ne.s32.totalorder %s37, %s40
      %p46 = scmp.eq.s32.totalorder %s13, 0
      %p47 = por %p45, %p46
      %p48 = scmp.ne.s32.totalorder %s37, %s40
      %p49 = scmp.eq.s32.totalorder %s18, 1
      %p50 = por %p48, %p49
      %p51 = scmp.ne.s32.totalorder %s40, %s41
      %p52 = scmp.eq.s32.totalorder %s18, 0
      %p53 = por %p51, %p52
      %p54 = scmp.ne.s32.totalorder %s40, %s41
      %p55 = scmp.eq.s32.totalorder %s19, 1
      %p56 = por %p54, %p55
      %p58 = scmp.ne.s32.totalorder %s41, %s57
      %p59 = scmp.eq.s32.totalorder %s19, 0
      %p60 = por %p58, %p59
      %s62 = sadd.s32 %s61, 1
      %p65 = scmp.eq.s32.totalorder %s13, 1
      %p66 = scmp.ne.s32.totalorder %s61, %s63
      %p67 = scmp.eq.s32.totalorder %s13, 0
      %p68 = por %p66, %p67
      %p69 = scmp.ne.s32.totalorder %s61, %s63
      %p70 = scmp.eq.s32.totalorder %s18, 1
      %p71 = por %p69, %p70
      %p72 = scmp.ne.s32.totalorder %s63, %s64
      %p73 = scmp.eq.s32.totalorder %s18, 0
      %p74 = por %p72, %p73
      %p75 = scmp.ne.s32.totalorder %s63, %s64
      %p76 = scmp.eq.s32.totalorder %s19, 1
      %p77 = por %p75, %p76
      %p79 = scmp.ne.s32.totalorder %s64, %s78
      %p80 = scmp.eq.s32.totalorder %s19, 0
      %p81 = por %p79, %p80
      %s83 = sadd.s32 %s82, 1
      %p86 = scmp.eq.s32.totalorder %s13, 1
      %p87 = scmp.ne.s32.totalorder %s82, %s84
      %p88 = scmp.eq.s32.totalorder %s13, 0
      %p89 = por %p87, %p88
      %p90 = scmp.ne.s32.totalorder %s82, %s84
      %p91 = scmp.eq.s32.totalorder %s18, 1
      %p92 = por %p90, %p91
      %p93 = scmp.ne.s32.totalorder %s84, %s85
      %p94 = scmp.eq.s32.totalorder %s18, 0
      %p95 = por %p93, %p94
      %p96 = scmp.ne.s32.totalorder %s84, %s85
      %p97 = scmp.eq.s32.totalorder %s19, 1
      %p98 = por %p96, %p97
      %p100 = scmp.ne.s32.totalorder %s85, %s99
      %p101 = scmp.eq.s32.totalorder %s19, 0
      %p102 = por %p100, %p101
      %s103 = ssub.s32 %s20, %s32
      %s104 = ssub.s32 %s21, %s28
      %s105 = sor.u32 %s103, %s104
      %p106 = scmp.eq.s32.totalorder %s105, 0
      %s108 = sadd.s32 %s107, 1
      %s109 = scalar_select %p106, %s107, %s108
      %p112 = pneg %p106
      %p113 = scmp.eq.s32.totalorder %s13, 1
      %p114 = por %p112, %p113
      %p115 = scmp.ne.s32.totalorder %s107, %s110
      %p116 = scmp.eq.s32.totalorder %s13, 0
      %p117 = por %p115, %p116
      %p118 = scmp.ne.s32.totalorder %s107, %s110
      %p119 = scmp.eq.s32.totalorder %s18, 1
      %p120 = por %p118, %p119
      %p121 = scmp.ne.s32.totalorder %s110, %s111
      %p122 = scmp.eq.s32.totalorder %s18, 0
      %p123 = por %p121, %p122
      %p124 = scmp.ne.s32.totalorder %s110, %s111
      %p125 = scmp.eq.s32.totalorder %s19, 1
      %p126 = por %p124, %p125
      %p128 = scmp.ne.s32.totalorder %s111, %s127
      %p129 = scmp.eq.s32.totalorder %s19, 0
      %p130 = por %p128, %p129
      %p131 = scmp.le.s32.totalorder 1, %s13
      %p132 = scmp.lt.s32.totalorder %s13, 3
      %p133 = pnand %p131, %p132
      %p134 = pneg %p133
      // Predicated region
      $region9: #{tpu_custom_call.1} parent=5 // pred_check
        _
      $region10: #{tpu_custom_call.1} parent=5 // pred_check_branch
        %136 = sbr.rel (%p133) target = $region12
      $region11: #{tpu_custom_call.1} parent=5 // pred_region
        %s137 = ssub.s32 %s13, 1
        // Predicated region
        $region13: #{tpu_custom_call.1} parent=11 // pred_check
          %p138 = pneg %p74
        $region14: #{tpu_custom_call.1} parent=11 // pred_check_branch
          %140 = sbr.rel (%p138) target = $region16
        $region15: #{tpu_custom_call.1} parent=11 // pred_region
          %s142 = ssub.s32 64, 64
          %143 = vsyncadd [#allocation4], %s142
          %s145 = sshll.u32 [#allocation3], 4
          %s146 = int_to_ptr.vmem [resolvable:$true] %s145
          %148 = dma.hbm_to_vmem [thread:$0]  %s1, 64, %s146, [#allocation4]
        $region16: #{tpu_custom_call.1} parent=11 // pred_fallthru
          _
        // Predicated region
        $region17: #{tpu_custom_call.1} parent=11 // pred_check
          %p149 = pneg %p95
        $region18: #{tpu_custom_call.1} parent=11 // pred_check_branch
          %151 = sbr.rel (%p149) target = $region20
        $region19: #{tpu_custom_call.1} parent=11 // pred_region
          _
        $region20: #{tpu_custom_call.1} parent=11 // pred_fallthru
          _
      $region12: #{tpu_custom_call.1} parent=5 // pred_fallthru
        _
      %p152 = scmp.lt.s32.totalorder %s13, 2
      // Predicated region
      $region21: #{tpu_custom_call.1} parent=5 // pred_check
        %p153 = pneg %p152
      $region22: #{tpu_custom_call.1} parent=5 // pred_check_branch
        %155 = sbr.rel (%p153) target = $region24
      $region23: #{tpu_custom_call.1} parent=5 // pred_region
        // Predicated region
        $region25: #{tpu_custom_call.1} parent=23 // pred_check
          %p156 = pneg %p47
        $region26: #{tpu_custom_call.1} parent=23 // pred_check_branch
          %158 = sbr.rel (%p156) target = $region28
        $region27: #{tpu_custom_call.1} parent=23 // pred_region
          %p159 = scmp.lt.s32.totalorder %s20, 1
          %s160 = scalar_select %p159, %s20, 1
          %p161 = scmp.lt.s32.totalorder %s21, 0
          %s162 = scalar_select %p161, %s21, 0
          %s163 = sadd.s32 %s162, %s160
          %s164 = smul.addr %s163, 4
          %s165 = scalar_lea.vmem %s0, %s164
        $region28: #{tpu_custom_call.1} parent=23 // pred_fallthru
          _
      $region24: #{tpu_custom_call.1} parent=5 // pred_fallthru
        _
      %p166 = scmp.le.s32.totalorder 1, %s13
      %p167 = scmp.lt.s32.totalorder %s13, 3
      %p168 = pnand %p166, %p167
      %p169 = pneg %p168
      // Predicated region
      $region29: #{tpu_custom_call.1} parent=5 // pred_check
        _
      $region30: #{tpu_custom_call.1} parent=5 // pred_check_branch
        %171 = sbr.rel (%p168) target = $region32
      $region31: #{tpu_custom_call.1} parent=5 // pred_region
        %s172 = ssub.s32 %s13, 1
        // Predicated region
        $region33: #{tpu_custom_call.1} parent=31 // pred_check
          %p173 = pneg %p74
        $region34: #{tpu_custom_call.1} parent=31 // pred_check_branch
          %175 = sbr.rel (%p173) target = $region36
        $region35: #{tpu_custom_call.1} parent=31 // pred_region
          %176 = dma.done [#allocation4], 64
        $region36: #{tpu_custom_call.1} parent=31 // pred_fallthru
          _
        %p177 = scmp.lt.s32.totalorder %s22, 1
        %s178 = scalar_select %p177, %s22, 1
        %p179 = scmp.lt.s32.totalorder %s23, 0
        %s180 = scalar_select %p179, %s23, 0
        %s181 = sadd.s32 %s180, %s178
        %s182 = smul.addr %s181, 4
        %s183 = scalar_lea.vmem %s0, %s182
        %p184 = pneg %p53
        %p185 = pneg %p50
        %p186 = pneg %p74
        %p187 = pneg %p71
        %p188 = pneg %p95
        %p189 = pneg %p92
        %p190 = pneg %p123
        %p191 = pneg %p120
        %s192 = sand.u32 %s110, 1
        %s193 = scalar_lea.sflag [#allocation5], %s192
        %s194 = sand.u32 %s110, 1
        %s195 = smul.addr %s194, 8
        %s196 = scalar_lea.vmem [#allocation6], %s195
        %p197 = scmp.lt.s32.totalorder %s22, 1
        %s198 = scalar_select %p197, %s22, 1
        %p199 = scmp.lt.s32.totalorder %s23, 0
        %s200 = scalar_select %p199, %s23, 0
        %s201 = sadd.s32 %s200, %s198
        %s202 = smul.addr %s201, 4
        %s203 = scalar_lea.vmem %s0, %s202
        %v205 = vld [vmem:[%s203] sm:$0xf]
        %v206 = vtanh.pop %v205
        %vm207 = vcmask 1043456
        %v208 = vsel %vm207, %v206, 0.0
        %v209 = vpack.c.bf16 0.0, %v208
        %v211 = vunpack.c.l.b16 %v209
        %v212 = vunpack.c.h.b16 %v209
        %v213 = vpack.c.b16 %v211, %v211
        %v214 = vpack.c.b16 %v212, %v212
        %217 = vst [vmem:[#allocation2] sm:$0xf] %v213
        %218 = vst [vmem:[#allocation2 + $0x4] sm:$0xf] %v214
        %v219 = vmul.f32 %v208, %v208
        %v220 = vpack.c.bf16 0.0, %v219
        %v222 = vunpack.c.l.b16 %v220
        %v223 = vunpack.c.h.b16 %v220
        %v224 = vpack.c.b16 %v222, %v222
        %v225 = vpack.c.b16 %v223, %v223
        %228 = vst [vmem:[#allocation2 + $0x8] sm:$0xf] %v224
        %229 = vst [vmem:[#allocation2 + $0xc] sm:$0xf] %v225
        %v230 = vmul.f32 %v219, %v208
        %v231 = vpack.c.bf16 0.0, %v230
        %v233 = vunpack.c.l.b16 %v231
        %v234 = vunpack.c.h.b16 %v231
        %v235 = vpack.c.b16 %v233, %v233
        %v236 = vpack.c.b16 %v234, %v234
        %239 = vst [vmem:[#allocation2 + $0x10] sm:$0xf] %v235
        %240 = vst [vmem:[#allocation2 + $0x14] sm:$0xf] %v236
        %v241 = vld [vmem:[#allocation3] sm:$0xf]
        %v242 = vld [vmem:[#allocation2] sm:$0xf]
        %v243 = vld [vmem:[#allocation2 + $0x4] sm:$0xf]
        %v244 = vld [vmem:[#allocation2 + $0x8] sm:$0xf]
        %v245 = vld [vmem:[#allocation2 + $0xc] sm:$0xf]
        %v246 = vld [vmem:[#allocation2 + $0x10] sm:$0xf]
        %v247 = vld [vmem:[#allocation2 + $0x14] sm:$0xf]
        %v248 = vld [vmem:[%s2] sm:$0xff]
        %250 = vset.pattern.permute.xlu0 0
        %251 = vperm.xlu0 %250, %v248
        %v252 = vpop.permute.xlu0 %251
        %v260 = vunpack.c.l.b16 %v242
        %v261 = vunpack.c.l.b16 %v243
        %v262 = vunpack.c.l.b16 %v244
        %v263 = vunpack.c.l.b16 %v245
        %v264 = vunpack.c.l.b16 %v246
        %v265 = vunpack.c.l.b16 %v247
        %v266 = vpack.c.b16 %v261, %v260
        %v267 = vpack.c.b16 %v263, %v262
        %v268 = vpack.c.b16 %v265, %v264
        %vm272 = vcmask 392192
        %v274 = vsel %vm272, %v241, 0
        %276 = vmatprep.subr.bf16.mxu0 0
        %277 = vmatpush1.bf16.msra.mxu0 0
        %278 = vmatprep.subr.bf16.mxu0 0
        %279 = vmatpush1.bf16.msra.mxu0 0
        %280 = vmatprep.subr.bf16.mxu0 0
        %281 = vmatpush1.bf16.msra.mxu0 0
        %282 = vmatprep.subr.bf16.mxu0 0
        %283 = vmatpush1.bf16.msra.mxu0 0
        %284 = vmatprep.subr.bf16.mxu0 0
        %285 = vmatpush1.bf16.msra.mxu0 0
        %286 = vmatprep.subr.bf16.mxu0 0
        %287 = vmatpush1.bf16.msra.mxu0 %v268
        %288 = vmatprep.subr.bf16.mxu0 0
        %289 = vmatpush1.bf16.msra.mxu0 %v267
        %290 = vmatprep.subr.bf16.mxu0 0
        %291 = vmatpush1.bf16.msra.mxu0 %v266
        %292 = vmatprep.subr.bf16.mxu0 0
        %293 = vmatpush2.bf16.msra.mxu0 0
        %294 = vmatprep.subr.bf16.mxu0 0
        %295 = vmatpush2.bf16.msra.mxu0 0
        %296 = vmatprep.subr.bf16.mxu0 0
        %297 = vmatpush2.bf16.msra.mxu0 0
        %298 = vmatprep.subr.bf16.mxu0 0
        %299 = vmatpush2.bf16.msra.mxu0 0
        %300 = vmatprep.subr.bf16.mxu0 0
        %301 = vmatpush2.bf16.msra.mxu0 0
        %302 = vmatprep.subr.bf16.mxu0 0
        %303 = vmatpush2.bf16.msra.mxu0 0
        %304 = vmatprep.subr.bf16.mxu0 0
        %305 = vmatpush2.bf16.msra.mxu0 0
        %306 = vmatprep.subr.bf16.mxu0 0
        %307 = vmatpush2.bf16.msra.mxu0 0
        %308 = vmatprep.mubr.bf16.mxu0 0
        %309 = vmatmul.mubr.bf16.gmra.mxu0 %v274
        %v310 = vpop.f32.mrf.mxu0
        %v311 = vadd.f32 %v252, %v310
        %v312 = vpop.f32.mrf.mxu0
        %v313 = vpop.f32.mrf.mxu0
        %v314 = vpop.f32.mrf.mxu0
        %315 = vdwg.mxu0
        %316 = vst [vmem:[%s196] sm:$0xff] %v311
        %s317 = sand.u32 %s110, 1
        %s318 = scalar_lea.sflag [#allocation5], %s317
        %s319 = sand.u32 %s110, 1
        %s320 = smul.addr %s319, 8
        %s321 = scalar_lea.vmem [#allocation6], %s320
        // Predicated region
        $region37: #{tpu_custom_call.1} parent=31 // pred_check
          %p322 = pneg %p120
        $region38: #{tpu_custom_call.1} parent=31 // pred_check_branch
          %324 = sbr.rel (%p322) target = $region40
        $region39: #{tpu_custom_call.1} parent=31 // pred_region
          %s326 = ssub.s32 128, 128
          %327 = vsyncadd %s318, %s326
          %s328 = sadd.s32 %s23, %s22
          %s329 = smul.addr %s328, 128
          %s330 = scalar_lea.hbm %s3, %s329
          %s332 = sshll.u32 %s321, 4
          %s333 = int_to_ptr.vmem [resolvable:$true] %s332
          %335 = dma.vmem_to_hbm [thread:$0]  %s333, 128, %s330, %s318
        $region40: #{tpu_custom_call.1} parent=31 // pred_fallthru
          _
      $region32: #{tpu_custom_call.1} parent=5 // pred_fallthru
        _
      %p336 = scmp.le.s32.totalorder 2, %s13
      // Predicated region
      $region41: #{tpu_custom_call.1} parent=5 // pred_check
        %p337 = pneg %p336
      $region42: #{tpu_custom_call.1} parent=5 // pred_check_branch
        %339 = sbr.rel (%p337) target = $region44
      $region43: #{tpu_custom_call.1} parent=5 // pred_region
        %s340 = ssub.s32 %s13, 2
        // Predicated region
        $region45: #{tpu_custom_call.1} parent=43 // pred_check
          %p341 = pneg %p126
        $region46: #{tpu_custom_call.1} parent=43 // pred_check_branch
          %343 = sbr.rel (%p341) target = $region48
        $region47: #{tpu_custom_call.1} parent=43 // pred_region
          %s344 = sand.u32 %s111, 1
          %s345 = scalar_lea.sflag [#allocation5], %s344
          %s346 = sand.u32 %s111, 1
          %s347 = smul.addr %s346, 8
          %s348 = scalar_lea.vmem [#allocation6], %s347
          %349 = dma.done %s345, 128
        $region48: #{tpu_custom_call.1} parent=43 // pred_fallthru
          _
      $region44: #{tpu_custom_call.1} parent=5 // pred_fallthru
        _
    $region6: #{tpu_custom_call.1} parent=1 // loop_footer
      %s17 = sadd.s32 1, %s13
    $region7: #{tpu_custom_call.1} parent=1 // loop_footer_branch
      %12 = sbr.rel target = $region3
    $region8: #{tpu_custom_call.1} parent=1 // loop_exit
      _
    %350 = vsyncpa [#allocation4], 1
    %s351 = scalar_lea.sflag [#allocation4], 1
    %352 = vsyncpa %s351, 1
    %353 = vsyncpa [#allocation5], 1
    %s354 = scalar_lea.sflag [#allocation5], 1
    %355 = vsyncpa %s354, 1

</llo_original>
